<compile_context>
chip_gen: v6e
topology: v6e:2x2x1
jax: 0.10.0
libtpu: 0.0.40
codegen_flags: <defaults>
</compile_context>

<pallas_src>
import jax
import jax.numpy as jnp
from jax.experimental import pallas as pl
from jax.experimental.pallas import tpu as pltpu


def _round_up(a, b):
    return (a + b - 1) // b * b


def _vmem_tile_bytes(rows, cols, nbytes):
    # rough padded-tile VMEM footprint estimate (sublane 8, lane 128)
    return _round_up(max(rows, 1), 8) * _round_up(max(cols, 1), 128) * nbytes


def _pick_tm(M, C, itemsize, block_rows=None, pipeline_budget=32 << 20):
    """Row-tile size: largest multiple of 8 keeping x+out double-buffered
    pipeline under `pipeline_budget`, capped by the request and by M, and
    split so the grid has >= 2 blocks when M allows (v7x megacore)."""
    per_row = 4 * _round_up(C, 128) * itemsize          # x + out, 2 buffers each
    cap = max(8, (pipeline_budget // per_row) // 8 * 8)
    tm = block_rows if block_rows is not None else 1024
    tm = min(tm, cap, _round_up(M, 8))
    if M > 8 and _round_up(M, 8) <= tm:                 # grid would be 1 -> split in 2
        tm = _round_up(pl.cdiv(M, 2), 8)
    return max(8, _round_up(tm, 8))


def _rep_adapter_kernel(x_ref, wa_ref, ba_ref, wb_ref, bb_ref, o_ref):
    # x_ref  : VMEM (TM, C)      bf16   row tile of flattened (B*N, C) input
    # wa_ref : VMEM (G, C, Hg)   bf16   conv_A weight, pre-split per group
    # ba_ref : VMEM (G, 1, Hg)   f32    conv_A bias, per group
    # wb_ref : VMEM (G, Hg, Cg)  bf16   router-fused grouped conv_B weight
    # bb_ref : VMEM (G, 1, Cg)   f32    router-fused conv_B bias (scale folded in)
    groups = wa_ref.shape[0]
    cg = wb_ref.shape[2]
    lane_dense = (cg % 128 == 0)        # static: per-group stores stay unmasked

    x = x_ref[...]                                                     # (TM, C) bf16
    parts = []
    for g in range(groups):                                            # static unroll, G small
        # conv_A columns for this group (1x1 conv == matmul), f32 accumulate.
        h = jnp.dot(x, wa_ref[g], preferred_element_type=jnp.float32)  # (TM, Hg) f32
        h = (h + ba_ref[g]).astype(x.dtype)                            # (TM, Hg) bf16
        # router-fused grouped conv_B for this group.
        y = jnp.dot(h, wb_ref[g], preferred_element_type=jnp.float32)  # (TM, Cg) f32
        y = y + bb_ref[g]                                              # (TM, Cg) f32
        if lane_dense:
            # residual + store directly into the group's lane-aligned C slice.
            xg = x[:, g * cg:(g + 1) * cg].astype(jnp.float32)
            o_ref[:, g * cg:(g + 1) * cg] = (xg + y).astype(o_ref.dtype)
        else:
            parts.append(y)
    if not lane_dense:
        # small-Cg fallback: single full-width (lane-dense) store.
        y_full = jnp.concatenate(parts, axis=-1)                       # (TM, C) f32
        o_ref[...] = (x.astype(jnp.float32) + y_full).astype(o_ref.dtype)


def rep_adapter_boxes(x, conv_a_w, conv_a_b, conv_b_w, conv_b_b, expert_weights,
                      *, groups=2, scale=1.0, t=10.0, block_rows=None):
    """x: (B, N, C); conv_a_w: (H, C) [torch (out,in,1) squeezed]; conv_a_b: (H,);
    conv_b_w: (R, C, H//groups) [torch grouped (out, in/groups, 1) squeezed];
    conv_b_b: (R, C); expert_weights: (R,)  (weight_kind='learn'/'fixed')."""
    B, N, C = x.shape
    H = conv_a_w.shape[0]
    R = conv_b_w.shape[0]
    dtype = x.dtype
    itemsize = jnp.dtype(dtype).itemsize
    Hg, Cg = H // groups, C // groups

    # ---- routing ('learn'/'fixed'): softmax(expert_weights / t), fold in scale ----
    w = jax.nn.softmax(expert_weights.astype(jnp.float32) / t, axis=-1)      # (R,)
    coef = w * jnp.float32(scale)                                            # (R,)

    # ---- conv_A weight pre-split per group (avoids in-kernel sub-lane h slicing) ----
    wa = conv_a_w.T.astype(dtype).reshape(C, groups, Hg).transpose(1, 0, 2)  # (G, C, Hg)
    ba = conv_a_b.astype(jnp.float32).reshape(groups, 1, Hg)                 # (G, 1, Hg)

    # ---- router fusion + grouped layout (no zero-padded densification) ----
    # conv_b_w[i, c, hl]: output channel c (group g = c // Cg) consumes
    # h[:, g*Hg:(g+1)*Hg].  Per-group dense matrix for router i: (Hg, Cg).
    wb_grp = conv_b_w.reshape(R, groups, Cg, Hg).astype(jnp.float32)         # (R,G,Cg,Hg)
    w_eff = jnp.einsum('r,rgch->ghc', coef, wb_grp).astype(dtype)            # (G,Hg,Cg)
    b_eff = (coef @ conv_b_b.astype(jnp.float32)).reshape(groups, 1, Cg)     # (G,1,Cg) f32

    # ---- flatten (B, N) into rows; ragged grid (no pad, no output slice) ----
    M = B * N
    xm = x.reshape(M, C)
    tm = _pick_tm(M, C, itemsize, block_rows)
    grid = (pl.cdiv(M, tm),)

    # explicit VMEM limit: x/out pipeline buffers + weight buffers + headroom,
    # capped at 48 MiB (fits v7x's 64 MiB per-TC VMEM with margin).
    vmem = (4 * _vmem_tile_bytes(tm, C, itemsize)
            + 2 * groups * (_vmem_tile_bytes(C, Hg, itemsize)
                            + _vmem_tile_bytes(1, Hg, 4)
                            + _vmem_tile_bytes(Hg, Cg, itemsize)
                            + _vmem_tile_bytes(1, Cg, 4))
            + (8 << 20))
    vmem_limit = int(min(max(vmem, 32 << 20), 48 << 20))

    out = pl.pallas_call(
        _rep_adapter_kernel,
        out_shape=jax.ShapeDtypeStruct((M, C), dtype),
        grid=grid,
        in_specs=[
            pl.BlockSpec((tm, C), lambda i: (i, 0)),                  # x row tile
            pl.BlockSpec((groups, C, Hg), lambda i: (0, 0, 0)),       # W_A (grouped)
            pl.BlockSpec((groups, 1, Hg), lambda i: (0, 0, 0)),       # b_A (grouped)
            pl.BlockSpec((groups, Hg, Cg), lambda i: (0, 0, 0)),      # W_eff (grouped)
            pl.BlockSpec((groups, 1, Cg), lambda i: (0, 0, 0)),       # b_eff (grouped)
        ],
        out_specs=pl.BlockSpec((tm, C), lambda i: (i, 0)),
        compiler_params=pltpu.CompilerParams(
            dimension_semantics=("parallel",),
            vmem_limit_bytes=vmem_limit),
    )(xm, wa, ba, w_eff, b_eff)

    return out.reshape(B, N, C)


def rep_adapter_ref(x, conv_a_w, conv_a_b, conv_b_w, conv_b_b, expert_weights,
                    *, groups=2, scale=1.0, t=10.0):
    """Pure-JAX reference of the PyTorch forward (eval mode)."""
    w = jax.nn.softmax(expert_weights.astype(jnp.float32) / t, axis=-1)
    xf = x.astype(jnp.float32)
    h = xf @ conv_a_w.T.astype(jnp.float32) + conv_a_b.astype(jnp.float32)
    H = conv_a_w.shape[0]
    C = x.shape[-1]
    Hg, Cg = H // groups, C // groups
    out = xf
    for i in range(conv_b_w.shape[0]):
        ys = []
        for g in range(groups):
            hg = h[..., g * Hg:(g + 1) * Hg]
            wg = conv_b_w[i, g * Cg:(g + 1) * Cg, :].astype(jnp.float32)  # (Cg, Hg)
            ys.append(hg @ wg.T)
        y = jnp.concatenate(ys, axis=-1) + conv_b_b[i].astype(jnp.float32)
        out = out + w[i] * scale * y
    return out.astype(x.dtype)


if __name__ == "__main__":
    def run_case(B, N, C, H, G, R, seed, scale=1.0, t=10.0, dtype=jnp.bfloat16):
        key = jax.random.PRNGKey(seed)
        k1, k2, k3, k4 = jax.random.split(key, 4)
        x = jax.random.normal(k1, (B, N, C), jnp.float32).astype(dtype)
        # conv_A: xavier-uniform weight, zero bias (matches module init)
        limit = (6.0 / (C + H)) ** 0.5
        conv_a_w = jax.random.uniform(k2, (H, C), jnp.float32, -limit, limit).astype(dtype)
        conv_a_b = jnp.zeros((H,), dtype)
        # conv_B: module zero-inits (adapter = identity); use small random values
        # here so the kernel exercises real compute.
        conv_b_w = (0.02 * jax.random.normal(k3, (R, C, H // G), jnp.float32)).astype(dtype)
        conv_b_b = (0.02 * jax.random.normal(k4, (R, C), jnp.float32)).astype(dtype)
        expert_weights = jnp.ones((R,), jnp.float32)   # 'learn' init: torch.ones(num_routers)

        out = rep_adapter_boxes(x, conv_a_w, conv_a_b, conv_b_w, conv_b_b,
                                expert_weights, groups=G, scale=scale, t=t)
        out = jax.block_until_ready(out)
        ref = rep_adapter_ref(x, conv_a_w, conv_a_b, conv_b_w, conv_b_b,
                              expert_weights, groups=G, scale=scale, t=t)
        assert out.shape == (B, N, C) and out.dtype == dtype
        err = float(jnp.max(jnp.abs(out.astype(jnp.float32) - ref.astype(jnp.float32))))
        assert err < 5e-2, f"max abs error {err} (case C={C})"

    # tiny config: Cg=16 -> concat fallback path, grid of 2 tiles
    run_case(B=2, N=8, C=32, H=8, G=2, R=3, seed=0)
    # Cg=128 -> lane-dense per-group direct stores + ragged last block (M=50, tm=32)
    run_case(B=2, N=25, C=256, H=8, G=2, R=3, seed=1)

    print("KERNEL_OK")
</pallas_src>

<mosaic_0001>
module attributes {stable_mosaic.version = 11 : i64} {
  func.func @_rep_adapter_kernel(%arg0: i32, %arg1: memref<8x32xbf16, #tpu.memory_space<vmem>>, %arg2: memref<2x32x4xbf16, #tpu.memory_space<vmem>>, %arg3: memref<2x1x4xf32, #tpu.memory_space<vmem>>, %arg4: memref<2x4x16xbf16, #tpu.memory_space<vmem>>, %arg5: memref<2x1x16xf32, #tpu.memory_space<vmem>>, %arg6: memref<8x32xbf16, #tpu.memory_space<vmem>>) attributes {dimension_semantics = [#tpu.dimension_semantics<parallel>], iteration_bounds = array<i64: 2>, scalar_prefetch = 0 : i64, scratch_operands = 0 : i64, tpu.core_type = #tpu.core_type<tc>, window_params = [{transform_indices = @transform_0, window_bounds = array<i64: 8, 32>}, {pipeline_mode = #tpu.pipeline_mode<synchronous>, transform_indices = @transform_1, window_bounds = array<i64: 2, 32, 4>}, {pipeline_mode = #tpu.pipeline_mode<synchronous>, transform_indices = @transform_2, window_bounds = array<i64: 2, 1, 4>}, {pipeline_mode = #tpu.pipeline_mode<synchronous>, transform_indices = @transform_3, window_bounds = array<i64: 2, 4, 16>}, {pipeline_mode = #tpu.pipeline_mode<synchronous>, transform_indices = @transform_4, window_bounds = array<i64: 2, 1, 16>}, {transform_indices = @transform_5, window_bounds = array<i64: 8, 32>}]} {
    %c0 = arith.constant 0 : index
    %c0_0 = arith.constant 0 : index
    %0 = vector.load %arg1[%c0, %c0_0] : memref<8x32xbf16, #tpu.memory_space<vmem>>, vector<8x32xbf16>
    %c0_1 = arith.constant 0 : index
    %c0_2 = arith.constant 0 : index
    %c0_3 = arith.constant 0 : index
    %1 = vector.load %arg2[%c0_1, %c0_2, %c0_3] : memref<2x32x4xbf16, #tpu.memory_space<vmem>>, vector<1x32x4xbf16>
    %2 = vector.shape_cast %1 : vector<1x32x4xbf16> to vector<32x4xbf16>
    %cst = arith.constant dense<0.000000e+00> : vector<8x4xf32>
    %3 = tpu.matmul %0, %2, %cst {dimension_numbers = #tpu.dot_dimension_numbers<[1], [0], [0], [1], [0, 0, 1, 1], [], []>} : vector<8x32xbf16>, vector<32x4xbf16>, vector<8x4xf32> -> vector<8x4xf32>
    %c0_4 = arith.constant 0 : index
    %c0_5 = arith.constant 0 : index
    %c0_6 = arith.constant 0 : index
    %4 = vector.load %arg3[%c0_4, %c0_5, %c0_6] : memref<2x1x4xf32, #tpu.memory_space<vmem>>, vector<1x1x4xf32>
    %5 = vector.shape_cast %4 : vector<1x1x4xf32> to vector<1x4xf32>
    %6 = vector.broadcast %5 : vector<1x4xf32> to vector<8x4xf32>
    %7 = arith.addf %3, %6 : vector<8x4xf32>
    %8 = arith.truncf %7 : vector<8x4xf32> to vector<8x4xbf16>
    %c0_7 = arith.constant 0 : index
    %c0_8 = arith.constant 0 : index
    %c0_9 = arith.constant 0 : index
    %9 = vector.load %arg4[%c0_7, %c0_8, %c0_9] : memref<2x4x16xbf16, #tpu.memory_space<vmem>>, vector<1x4x16xbf16>
    %10 = vector.shape_cast %9 : vector<1x4x16xbf16> to vector<4x16xbf16>
    %cst_10 = arith.constant dense<0.000000e+00> : vector<8x16xf32>
    %11 = tpu.matmul %8, %10, %cst_10 {dimension_numbers = #tpu.dot_dimension_numbers<[1], [0], [0], [1], [0, 0, 1, 1], [], []>} : vector<8x4xbf16>, vector<4x16xbf16>, vector<8x16xf32> -> vector<8x16xf32>
    %c0_11 = arith.constant 0 : index
    %c0_12 = arith.constant 0 : index
    %c0_13 = arith.constant 0 : index
    %12 = vector.load %arg5[%c0_11, %c0_12, %c0_13] : memref<2x1x16xf32, #tpu.memory_space<vmem>>, vector<1x1x16xf32>
    %13 = vector.shape_cast %12 : vector<1x1x16xf32> to vector<1x16xf32>
    %14 = vector.broadcast %13 : vector<1x16xf32> to vector<8x16xf32>
    %15 = arith.addf %11, %14 : vector<8x16xf32>
    %c1 = arith.constant 1 : index
    %c0_14 = arith.constant 0 : index
    %c0_15 = arith.constant 0 : index
    %16 = vector.load %arg2[%c1, %c0_14, %c0_15] : memref<2x32x4xbf16, #tpu.memory_space<vmem>>, vector<1x32x4xbf16>
    %17 = vector.shape_cast %16 : vector<1x32x4xbf16> to vector<32x4xbf16>
    %cst_16 = arith.constant dense<0.000000e+00> : vector<8x4xf32>
    %18 = tpu.matmul %0, %17, %cst_16 {dimension_numbers = #tpu.dot_dimension_numbers<[1], [0], [0], [1], [0, 0, 1, 1], [], []>} : vector<8x32xbf16>, vector<32x4xbf16>, vector<8x4xf32> -> vector<8x4xf32>
    %c1_17 = arith.constant 1 : index
    %c0_18 = arith.constant 0 : index
    %c0_19 = arith.constant 0 : index
    %19 = vector.load %arg3[%c1_17, %c0_18, %c0_19] : memref<2x1x4xf32, #tpu.memory_space<vmem>>, vector<1x1x4xf32>
    %20 = vector.shape_cast %19 : vector<1x1x4xf32> to vector<1x4xf32>
    %21 = vector.broadcast %20 : vector<1x4xf32> to vector<8x4xf32>
    %22 = arith.addf %18, %21 : vector<8x4xf32>
    %23 = arith.truncf %22 : vector<8x4xf32> to vector<8x4xbf16>
    %c1_20 = arith.constant 1 : index
    %c0_21 = arith.constant 0 : index
    %c0_22 = arith.constant 0 : index
    %24 = vector.load %arg4[%c1_20, %c0_21, %c0_22] : memref<2x4x16xbf16, #tpu.memory_space<vmem>>, vector<1x4x16xbf16>
    %25 = vector.shape_cast %24 : vector<1x4x16xbf16> to vector<4x16xbf16>
    %cst_23 = arith.constant dense<0.000000e+00> : vector<8x16xf32>
    %26 = tpu.matmul %23, %25, %cst_23 {dimension_numbers = #tpu.dot_dimension_numbers<[1], [0], [0], [1], [0, 0, 1, 1], [], []>} : vector<8x4xbf16>, vector<4x16xbf16>, vector<8x16xf32> -> vector<8x16xf32>
    %c1_24 = arith.constant 1 : index
    %c0_25 = arith.constant 0 : index
    %c0_26 = arith.constant 0 : index
    %27 = vector.load %arg5[%c1_24, %c0_25, %c0_26] : memref<2x1x16xf32, #tpu.memory_space<vmem>>, vector<1x1x16xf32>
    %28 = vector.shape_cast %27 : vector<1x1x16xf32> to vector<1x16xf32>
    %29 = vector.broadcast %28 : vector<1x16xf32> to vector<8x16xf32>
    %30 = arith.addf %26, %29 : vector<8x16xf32>
    %31 = tpu.concatenate %15, %30 in 1 : vector<8x16xf32>, vector<8x16xf32> -> vector<8x32xf32>
    %32 = arith.extf %0 : vector<8x32xbf16> to vector<8x32xf32>
    %33 = arith.addf %32, %31 : vector<8x32xf32>
    %34 = arith.truncf %33 : vector<8x32xf32> to vector<8x32xbf16>
    %c0_27 = arith.constant 0 : index
    %c0_28 = arith.constant 0 : index
    %35 = vector.load %arg6[%c0_27, %c0_28] : memref<8x32xbf16, #tpu.memory_space<vmem>>, vector<8x32xbf16>
    tpu.vector_store %arg6[%c0_27, %c0_28], %34 {strides = array<i32>} : memref<8x32xbf16, #tpu.memory_space<vmem>>, vector<8x32xbf16>,
    return
  }
  func.func @transform_0(%arg0: i32) -> (i32, i32) {
    %c0_i32 = arith.constant 0 : i32
    %c0_i32_0 = arith.constant 0 : i32
    return %arg0, %c0_i32 : i32, i32
  }
  func.func @transform_1(%arg0: i32) -> (i32, i32, i32) {
    %c0_i32 = arith.constant 0 : i32
    %c0_i32_0 = arith.constant 0 : i32
    %c0_i32_1 = arith.constant 0 : i32
    %c0_i32_2 = arith.constant 0 : i32
    return %c0_i32, %c0_i32_0, %c0_i32_1 : i32, i32, i32
  }
  func.func @transform_2(%arg0: i32) -> (i32, i32, i32) {
    %c0_i32 = arith.constant 0 : i32
    %c0_i32_0 = arith.constant 0 : i32
    %c0_i32_1 = arith.constant 0 : i32
    %c0_i32_2 = arith.constant 0 : i32
    return %c0_i32, %c0_i32_0, %c0_i32_1 : i32, i32, i32
  }
  func.func @transform_3(%arg0: i32) -> (i32, i32, i32) {
    %c0_i32 = arith.constant 0 : i32
    %c0_i32_0 = arith.constant 0 : i32
    %c0_i32_1 = arith.constant 0 : i32
    %c0_i32_2 = arith.constant 0 : i32
    return %c0_i32, %c0_i32_0, %c0_i32_1 : i32, i32, i32
  }
  func.func @transform_4(%arg0: i32) -> (i32, i32, i32) {
    %c0_i32 = arith.constant 0 : i32
    %c0_i32_0 = arith.constant 0 : i32
    %c0_i32_1 = arith.constant 0 : i32
    %c0_i32_2 = arith.constant 0 : i32
    return %c0_i32, %c0_i32_0, %c0_i32_1 : i32, i32, i32
  }
  func.func @transform_5(%arg0: i32) -> (i32, i32) {
    %c0_i32 = arith.constant 0 : i32
    %c0_i32_0 = arith.constant 0 : i32
    return %arg0, %c0_i32 : i32, i32
  }
}

</mosaic_0001>

<llo_original>
// kernel: tpu_custom_call.1
$region0: #{tpu_custom_call.1}
  #allocation0 [shape = 'u32[]', space=smem, size = 0x4, offset = 0x4, fixed_abs, tag = 'smem constant byte address 0x4 - core index']
  #allocation1 [shape = 'u32[144,128]{1,0:T(1,128)}', space=vmem, size = 0x12000, scoped, tag = 'internal scratch']
  %s0 = inlined_call_operand.vmem [shape: bf16[16,32], index: 0, kind: input, shape index: {}]
  %s1 = inlined_call_operand.vmem [shape: bf16[2,32,4], index: 1, kind: input, shape index: {}]
  %s2 = inlined_call_operand.vmem [shape: f32[2,1,4], index: 2, kind: input, shape index: {}]
  %s3 = inlined_call_operand.vmem [shape: bf16[2,4,16], index: 3, kind: input, shape index: {}]
  %s4 = inlined_call_operand.vmem [shape: f32[2,1,16], index: 4, kind: input, shape index: {}]
  %s5 = inlined_call_operand.hbm [shape: bf16[16,32], index: 5, kind: output, shape index: {}]
  %s6 = sld [smem:[#allocation0]]
  $region53: #{tpu_custom_call.1} parent=0
    _
  %s8 = ssub.s32 1, %s6
  %s9 = scalar_select 0, %s8, %s6
  $region1: #{tpu_custom_call.1} parent=0
    #allocation2 [shape = 'u8[4096]{0}', space=vmem, size = 0x1000, scoped, tag = 'output window, operand 0']
    #allocation3 [shape = 's32[2]{0}', space=sflag, size = 0x8, scoped, tag = 'scoped memory for tpu_custom_call.1']
    %10 = vsyncpa [#allocation3], 0
    %s11 = scalar_lea.sflag [#allocation3], 1
    %12 = vsyncpa %s11, 0
    loop: start=0, step=1, limit=4
    $region2: #{tpu_custom_call.1} parent=1 // loop_pre_header
      _
    $region3: #{tpu_custom_call.1} parent=1 // loop_header
      %s14 = sphi 0, %s18
      %p15 = scmp.ge.s32.totalorder %s14, 4
      %s24 = sphi 0, %s26
      %s27 = sphi 0, %s24
      %s28 = sphi 0, %s27
      %s44 = sphi 0, %s28
      %s48 = sphi 0, %s48
      %s50 = sphi 0, %s48
      %s51 = sphi 0, %s50
      %s65 = sphi 0, %s51
      %s69 = sphi 0, %s69
      %s71 = sphi 0, %s69
      %s72 = sphi 0, %s71
      %s86 = sphi 0, %s72
      %s90 = sphi 0, %s90
      %s92 = sphi 0, %s90
      %s93 = sphi 0, %s92
      %s107 = sphi 0, %s93
      %s111 = sphi 0, %s111
      %s113 = sphi 0, %s111
      %s114 = sphi 0, %s113
      %s128 = sphi 0, %s114
      %s134 = sphi 0, %s136
      %s137 = sphi 0, %s134
      %s138 = sphi 0, %s137
      %s154 = sphi 0, %s138
    $region4: #{tpu_custom_call.1} parent=1 // loop_header_branch
      %17 = sbr.rel (%p15) target = $region8
    $region5: #{tpu_custom_call.1} parent=1 // loop_body
      %s19 = ssub.s32 %s14, 1
      %s20 = ssub.s32 %s14, 2
      %s21 = sadd.s32 %s14, 1
      %s22 = ssub.s32 %s14, %s21
      %p23 = scmp.eq.s32.totalorder %s22, 0
      %s25 = sadd.s32 %s24, 1
      %s26 = scalar_select %p23, %s24, %s25
      %p29 = pneg %p23
      %p30 = scmp.eq.s32.totalorder %s14, 1
      %p31 = por %p29, %p30
      %p32 = scmp.ne.s32.totalorder %s24, %s27
      %p33 = scmp.eq.s32.totalorder %s14, 0
      %p34 = por %p32, %p33
      %p35 = scmp.ne.s32.totalorder %s24, %s27
      %p36 = scmp.eq.s32.totalorder %s19, 1
      %p37 = por %p35, %p36
      %p38 = scmp.ne.s32.totalorder %s27, %s28
      %p39 = scmp.eq.s32.totalorder %s19, 0
      %p40 = por %p38, %p39
      %p41 = scmp.ne.s32.totalorder %s27, %s28
      %p42 = scmp.eq.s32.totalorder %s20, 1
      %p43 = por %p41, %p42
      %p45 = scmp.ne.s32.totalorder %s28, %s44
      %p46 = scmp.eq.s32.totalorder %s20, 0
      %p47 = por %p45, %p46
      %s49 = sadd.s32 %s48, 1
      %p52 = scmp.eq.s32.totalorder %s14, 1
      %p53 = scmp.ne.s32.totalorder %s48, %s50
      %p54 = scmp.eq.s32.totalorder %s14, 0
      %p55 = por %p53, %p54
      %p56 = scmp.ne.s32.totalorder %s48, %s50
      %p57 = scmp.eq.s32.totalorder %s19, 1
      %p58 = por %p56, %p57
      %p59 = scmp.ne.s32.totalorder %s50, %s51
      %p60 = scmp.eq.s32.totalorder %s19, 0
      %p61 = por %p59, %p60
      %p62 = scmp.ne.s32.totalorder %s50, %s51
      %p63 = scmp.eq.s32.totalorder %s20, 1
      %p64 = por %p62, %p63
      %p66 = scmp.ne.s32.totalorder %s51, %s65
      %p67 = scmp.eq.s32.totalorder %s20, 0
      %p68 = por %p66, %p67
      %s70 = sadd.s32 %s69, 1
      %p73 = scmp.eq.s32.totalorder %s14, 1
      %p74 = scmp.ne.s32.totalorder %s69, %s71
      %p75 = scmp.eq.s32.totalorder %s14, 0
      %p76 = por %p74, %p75
      %p77 = scmp.ne.s32.totalorder %s69, %s71
      %p78 = scmp.eq.s32.totalorder %s19, 1
      %p79 = por %p77, %p78
      %p80 = scmp.ne.s32.totalorder %s71, %s72
      %p81 = scmp.eq.s32.totalorder %s19, 0
      %p82 = por %p80, %p81
      %p83 = scmp.ne.s32.totalorder %s71, %s72
      %p84 = scmp.eq.s32.totalorder %s20, 1
      %p85 = por %p83, %p84
      %p87 = scmp.ne.s32.totalorder %s72, %s86
      %p88 = scmp.eq.s32.totalorder %s20, 0
      %p89 = por %p87, %p88
      %s91 = sadd.s32 %s90, 1
      %p94 = scmp.eq.s32.totalorder %s14, 1
      %p95 = scmp.ne.s32.totalorder %s90, %s92
      %p96 = scmp.eq.s32.totalorder %s14, 0
      %p97 = por %p95, %p96
      %p98 = scmp.ne.s32.totalorder %s90, %s92
      %p99 = scmp.eq.s32.totalorder %s19, 1
      %p100 = por %p98, %p99
      %p101 = scmp.ne.s32.totalorder %s92, %s93
      %p102 = scmp.eq.s32.totalorder %s19, 0
      %p103 = por %p101, %p102
      %p104 = scmp.ne.s32.totalorder %s92, %s93
      %p105 = scmp.eq.s32.totalorder %s20, 1
      %p106 = por %p104, %p105
      %p108 = scmp.ne.s32.totalorder %s93, %s107
      %p109 = scmp.eq.s32.totalorder %s20, 0
      %p110 = por %p108, %p109
      %s112 = sadd.s32 %s111, 1
      %p115 = scmp.eq.s32.totalorder %s14, 1
      %p116 = scmp.ne.s32.totalorder %s111, %s113
      %p117 = scmp.eq.s32.totalorder %s14, 0
      %p118 = por %p116, %p117
      %p119 = scmp.ne.s32.totalorder %s111, %s113
      %p120 = scmp.eq.s32.totalorder %s19, 1
      %p121 = por %p119, %p120
      %p122 = scmp.ne.s32.totalorder %s113, %s114
      %p123 = scmp.eq.s32.totalorder %s19, 0
      %p124 = por %p122, %p123
      %p125 = scmp.ne.s32.totalorder %s113, %s114
      %p126 = scmp.eq.s32.totalorder %s20, 1
      %p127 = por %p125, %p126
      %p129 = scmp.ne.s32.totalorder %s114, %s128
      %p130 = scmp.eq.s32.totalorder %s20, 0
      %p131 = por %p129, %p130
      %s132 = ssub.s32 %s14, %s21
      %p133 = scmp.eq.s32.totalorder %s132, 0
      %s135 = sadd.s32 %s134, 1
      %s136 = scalar_select %p133, %s134, %s135
      %p139 = pneg %p133
      %p140 = scmp.eq.s32.totalorder %s14, 1
      %p141 = por %p139, %p140
      %p142 = scmp.ne.s32.totalorder %s134, %s137
      %p143 = scmp.eq.s32.totalorder %s14, 0
      %p144 = por %p142, %p143
      %p145 = scmp.ne.s32.totalorder %s134, %s137
      %p146 = scmp.eq.s32.totalorder %s19, 1
      %p147 = por %p145, %p146
      %p148 = scmp.ne.s32.totalorder %s137, %s138
      %p149 = scmp.eq.s32.totalorder %s19, 0
      %p150 = por %p148, %p149
      %p151 = scmp.ne.s32.totalorder %s137, %s138
      %p152 = scmp.eq.s32.totalorder %s20, 1
      %p153 = por %p151, %p152
      %p155 = scmp.ne.s32.totalorder %s138, %s154
      %p156 = scmp.eq.s32.totalorder %s20, 0
      %p157 = por %p155, %p156
      %p158 = scmp.le.s32.totalorder 1, %s14
      %p159 = scmp.lt.s32.totalorder %s14, 3
      %p160 = pnand %p158, %p159
      %p161 = pneg %p160
      // Predicated region
      $region9: #{tpu_custom_call.1} parent=5 // pred_check
        _
      $region10: #{tpu_custom_call.1} parent=5 // pred_check_branch
        %163 = sbr.rel (%p160) target = $region12
      $region11: #{tpu_custom_call.1} parent=5 // pred_region
        %s164 = ssub.s32 %s14, 1
        // Predicated region
        $region13: #{tpu_custom_call.1} parent=11 // pred_check
          %p165 = pneg %p61
        $region14: #{tpu_custom_call.1} parent=11 // pred_check_branch
          %167 = sbr.rel (%p165) target = $region16
        $region15: #{tpu_custom_call.1} parent=11 // pred_region
          _
        $region16: #{tpu_custom_call.1} parent=11 // pred_fallthru
          _
        // Predicated region
        $region17: #{tpu_custom_call.1} parent=11 // pred_check
          %p168 = pneg %p82
        $region18: #{tpu_custom_call.1} parent=11 // pred_check_branch
          %170 = sbr.rel (%p168) target = $region20
        $region19: #{tpu_custom_call.1} parent=11 // pred_region
          _
        $region20: #{tpu_custom_call.1} parent=11 // pred_fallthru
          _
        // Predicated region
        $region21: #{tpu_custom_call.1} parent=11 // pred_check
          %p171 = pneg %p103
        $region22: #{tpu_custom_call.1} parent=11 // pred_check_branch
          %173 = sbr.rel (%p171) target = $region24
        $region23: #{tpu_custom_call.1} parent=11 // pred_region
          _
        $region24: #{tpu_custom_call.1} parent=11 // pred_fallthru
          _
        // Predicated region
        $region25: #{tpu_custom_call.1} parent=11 // pred_check
          %p174 = pneg %p124
        $region26: #{tpu_custom_call.1} parent=11 // pred_check_branch
          %176 = sbr.rel (%p174) target = $region28
        $region27: #{tpu_custom_call.1} parent=11 // pred_region
          _
        $region28: #{tpu_custom_call.1} parent=11 // pred_fallthru
          _
      $region12: #{tpu_custom_call.1} parent=5 // pred_fallthru
        _
      %p177 = scmp.lt.s32.totalorder %s14, 2
      // Predicated region
      $region29: #{tpu_custom_call.1} parent=5 // pred_check
        %p178 = pneg %p177
      $region30: #{tpu_custom_call.1} parent=5 // pred_check_branch
        %180 = sbr.rel (%p178) target = $region32
      $region31: #{tpu_custom_call.1} parent=5 // pred_region
        // Predicated region
        $region33: #{tpu_custom_call.1} parent=31 // pred_check
          %p181 = pneg %p34
        $region34: #{tpu_custom_call.1} parent=31 // pred_check_branch
          %183 = sbr.rel (%p181) target = $region36
        $region35: #{tpu_custom_call.1} parent=31 // pred_region
          %p184 = scmp.lt.s32.totalorder %s14, 1
          %s185 = scalar_select %p184, %s14, 1
          %s186 = smul.addr %s185, 4
          %s187 = scalar_lea.vmem %s0, %s186
        $region36: #{tpu_custom_call.1} parent=31 // pred_fallthru
          _
      $region32: #{tpu_custom_call.1} parent=5 // pred_fallthru
        _
      %p188 = scmp.le.s32.totalorder 1, %s14
      %p189 = scmp.lt.s32.totalorder %s14, 3
      %p190 = pnand %p188, %p189
      %p191 = pneg %p190
      // Predicated region
      $region37: #{tpu_custom_call.1} parent=5 // pred_check
        _
      $region38: #{tpu_custom_call.1} parent=5 // pred_check_branch
        %193 = sbr.rel (%p190) target = $region40
      $region39: #{tpu_custom_call.1} parent=5 // pred_region
        %s194 = ssub.s32 %s14, 1
        %p195 = scmp.lt.s32.totalorder %s19, 1
        %s196 = scalar_select %p195, %s19, 1
        %s197 = smul.addr %s196, 4
        %s198 = scalar_lea.vmem %s0, %s197
        %p199 = pneg %p40
        %p200 = pneg %p37
        %p201 = pneg %p61
        %p202 = pneg %p58
        %p203 = pneg %p82
        %p204 = pneg %p79
        %p205 = pneg %p103
        %p206 = pneg %p100
        %p207 = pneg %p124
        %p208 = pneg %p121
        %p209 = pneg %p150
        %p210 = pneg %p147
        %s211 = sand.u32 %s137, 1
        %s212 = scalar_lea.sflag [#allocation3], %s211
        %s213 = sand.u32 %s137, 1
        %s214 = smul.addr %s213, 4
        %s215 = scalar_lea.vmem [#allocation2], %s214
        %p216 = scmp.lt.s32.totalorder %s19, 1
        %s217 = scalar_select %p216, %s19, 1
        %s218 = smul.addr %s217, 4
        %s219 = scalar_lea.vmem %s0, %s218
        %v221 = vld [vmem:[%s219] sm:$0xf]
        %v222 = vld [vmem:[%s1] sm:$0xf]
        %v223 = vld [vmem:[%s1 + $0x4] sm:$0xf]
        %v224 = vld [vmem:[%s1 + $0x8] sm:$0xf]
        %v225 = vld [vmem:[%s1 + $0xc] sm:$0xf]
        %v226 = vld [vmem:[%s2] sm:$0x1]
        %v228 = vlaneseq
        %v229 = vshrl.u32 %v228, 7
        %v230 = vsub.s32 0, %v229
        %v231 = vrot.slane %v226, %v230
        %v237 = vunpack.c.l.b16 %v222
        %v238 = vunpack.c.l.b16 %v223
        %v239 = vunpack.c.l.b16 %v224
        %v240 = vunpack.c.l.b16 %v225
        %v241 = vpack.c.b16 %v238, %v237
        %v242 = vpack.c.b16 %v240, %v239
        %vm245 = vcmask 261120
        %v247 = vsel %vm245, %v221, 0
        %249 = vmatprep.subr.bf16.mxu0 0
        %250 = vmatpush1.bf16.msra.mxu0 0
        %251 = vmatprep.subr.bf16.mxu0 0
        %252 = vmatpush1.bf16.msra.mxu0 0
        %253 = vmatprep.subr.bf16.mxu0 0
        %254 = vmatpush1.bf16.msra.mxu0 0
        %255 = vmatprep.subr.bf16.mxu0 0
        %256 = vmatpush1.bf16.msra.mxu0 0
        %257 = vmatprep.subr.bf16.mxu0 0
        %258 = vmatpush1.bf16.msra.mxu0 0
        %259 = vmatprep.subr.bf16.mxu0 0
        %260 = vmatpush1.bf16.msra.mxu0 0
        %261 = vmatprep.subr.bf16.mxu0 0
        %262 = vmatpush1.bf16.msra.mxu0 %v242
        %263 = vmatprep.subr.bf16.mxu0 0
        %264 = vmatpush1.bf16.msra.mxu0 %v241
        %265 = vmatprep.subr.bf16.mxu0 0
        %266 = vmatpush2.bf16.msra.mxu0 0
        %267 = vmatprep.subr.bf16.mxu0 0
        %268 = vmatpush2.bf16.msra.mxu0 0
        %269 = vmatprep.subr.bf16.mxu0 0
        %270 = vmatpush2.bf16.msra.mxu0 0
        %271 = vmatprep.subr.bf16.mxu0 0
        %272 = vmatpush2.bf16.msra.mxu0 0
        %273 = vmatprep.subr.bf16.mxu0 0
        %274 = vmatpush2.bf16.msra.mxu0 0
        %275 = vmatprep.subr.bf16.mxu0 0
        %276 = vmatpush2.bf16.msra.mxu0 0
        %277 = vmatprep.subr.bf16.mxu0 0
        %278 = vmatpush2.bf16.msra.mxu0 0
        %279 = vmatprep.subr.bf16.mxu0 0
        %280 = vmatpush2.bf16.msra.mxu0 0
        %281 = vmatprep.mubr.bf16.mxu0 0
        %282 = vmatmul.mubr.bf16.gmra.mxu0 %v247
        %v283 = vpop.f32.mrf.mxu0
        %v284 = vadd.f32 %v231, %v283
        %v285 = vpop.f32.mrf.mxu0
        %v286 = vpop.f32.mrf.mxu0
        %v287 = vpop.f32.mrf.mxu0
        %288 = vdwg.mxu0
        %v289 = vpack.c.bf16 %v284, %v284
        %v290 = vld [vmem:[%s3] sm:$0x3]
        %v291 = vld [vmem:[%s4] sm:$0x1]
        %v293 = vlaneseq
        %v294 = vshrl.u32 %v293, 7
        %v295 = vsub.s32 0, %v294
        %v296 = vrot.slane %v291, %v295
        %vm298 = vcmask 31744
        %v300 = vsel %vm298, %v289, 0
        %vm302 = vcmask 1041408
        %v304 = vsel %vm302, %v290, 0
        %306 = vmatprep.subr.bf16.mxu0 0
        %307 = vmatpush1.bf16.msra.mxu0 0
        %308 = vmatprep.subr.bf16.mxu0 0
        %309 = vmatpush1.bf16.msra.mxu0 0
        %310 = vmatprep.subr.bf16.mxu0 0
        %311 = vmatpush1.bf16.msra.mxu0 0
        %312 = vmatprep.subr.bf16.mxu0 0
        %313 = vmatpush1.bf16.msra.mxu0 0
        %314 = vmatprep.subr.bf16.mxu0 0
        %315 = vmatpush1.bf16.msra.mxu0 0
        %316 = vmatprep.subr.bf16.mxu0 0
        %317 = vmatpush1.bf16.msra.mxu0 0
        %318 = vmatprep.subr.bf16.mxu0 0
        %319 = vmatpush1.bf16.msra.mxu0 0
        %320 = vmatprep.subr.bf16.mxu0 0
        %321 = vmatpush1.bf16.msra.mxu0 %v304
        %322 = vmatprep.subr.bf16.mxu0 0
        %323 = vmatpush2.bf16.msra.mxu0 0
        %324 = vmatprep.subr.bf16.mxu0 0
        %325 = vmatpush2.bf16.msra.mxu0 0
        %326 = vmatprep.subr.bf16.mxu0 0
        %327 = vmatpush2.bf16.msra.mxu0 0
        %328 = vmatprep.subr.bf16.mxu0 0
        %329 = vmatpush2.bf16.msra.mxu0 0
        %330 = vmatprep.subr.bf16.mxu0 0
        %331 = vmatpush2.bf16.msra.mxu0 0
        %332 = vmatprep.subr.bf16.mxu0 0
        %333 = vmatpush2.bf16.msra.mxu0 0
        %334 = vmatprep.subr.bf16.mxu0 0
        %335 = vmatpush2.bf16.msra.mxu0 0
        %336 = vmatprep.subr.bf16.mxu0 0
        %337 = vmatpush2.bf16.msra.mxu0 0
        %338 = vmatprep.mubr.bf16.mxu0 0
        %339 = vmatmul.mubr.bf16.gmra.mxu0 %v300
        %v340 = vpop.f32.mrf.mxu0
        %v341 = vadd.f32 %v296, %v340
        %v342 = vpop.f32.mrf.mxu0
        %v343 = vpop.f32.mrf.mxu0
        %v344 = vpop.f32.mrf.mxu0
        %345 = vdwg.mxu0
        %s346 = scalar_lea.vmem %s1, 16
        %v347 = vld [vmem:[%s346] sm:$0xf]
        %v348 = vld [vmem:[%s346 + $0x4] sm:$0xf]
        %v349 = vld [vmem:[%s346 + $0x8] sm:$0xf]
        %v350 = vld [vmem:[%s346 + $0xc] sm:$0xf]
        %s351 = scalar_lea.vmem %s2, 1
        %v352 = vld [vmem:[%s351] sm:$0x1]
        %v354 = vlaneseq
        %v355 = vshrl.u32 %v354, 7
        %v356 = vsub.s32 0, %v355
        %v357 = vrot.slane %v352, %v356
        %v363 = vunpack.c.l.b16 %v347
        %v364 = vunpack.c.l.b16 %v348
        %v365 = vunpack.c.l.b16 %v349
        %v366 = vunpack.c.l.b16 %v350
        %v367 = vpack.c.b16 %v364, %v363
        %v368 = vpack.c.b16 %v366, %v365
        %371 = vmatprep.subr.bf16.mxu0 0
        %372 = vmatpush1.bf16.msra.mxu0 0
        %373 = vmatprep.subr.bf16.mxu0 0
        %374 = vmatpush1.bf16.msra.mxu0 0
        %375 = vmatprep.subr.bf16.mxu0 0
        %376 = vmatpush1.bf16.msra.mxu0 0
        %377 = vmatprep.subr.bf16.mxu0 0
        %378 = vmatpush1.bf16.msra.mxu0 0
        %379 = vmatprep.subr.bf16.mxu0 0
        %380 = vmatpush1.bf16.msra.mxu0 0
        %381 = vmatprep.subr.bf16.mxu0 0
        %382 = vmatpush1.bf16.msra.mxu0 0
        %383 = vmatprep.subr.bf16.mxu0 0
        %384 = vmatpush1.bf16.msra.mxu0 %v368
        %385 = vmatprep.subr.bf16.mxu0 0
        %386 = vmatpush1.bf16.msra.mxu0 %v367
        %387 = vmatprep.subr.bf16.mxu0 0
        %388 = vmatpush2.bf16.msra.mxu0 0
        %389 = vmatprep.subr.bf16.mxu0 0
        %390 = vmatpush2.bf16.msra.mxu0 0
        %391 = vmatprep.subr.bf16.mxu0 0
        %392 = vmatpush2.bf16.msra.mxu0 0
        %393 = vmatprep.subr.bf16.mxu0 0
        %394 = vmatpush2.bf16.msra.mxu0 0
        %395 = vmatprep.subr.bf16.mxu0 0
        %396 = vmatpush2.bf16.msra.mxu0 0
        %397 = vmatprep.subr.bf16.mxu0 0
        %398 = vmatpush2.bf16.msra.mxu0 0
        %399 = vmatprep.subr.bf16.mxu0 0
        %400 = vmatpush2.bf16.msra.mxu0 0
        %401 = vmatprep.subr.bf16.mxu0 0
        %402 = vmatpush2.bf16.msra.mxu0 0
        %403 = vmatprep.mubr.bf16.mxu0 0
        %404 = vmatmul.mubr.bf16.gmra.mxu0 %v247
        %v405 = vpop.f32.mrf.mxu0
        %v406 = vadd.f32 %v357, %v405
        %v407 = vpop.f32.mrf.mxu0
        %v408 = vpop.f32.mrf.mxu0
        %v409 = vpop.f32.mrf.mxu0
        %410 = vdwg.mxu0
        %v411 = vpack.c.bf16 %v406, %v406
        %s412 = scalar_lea.vmem %s3, 2
        %v413 = vld [vmem:[%s412] sm:$0x3]
        %s414 = scalar_lea.vmem %s4, 1
        %v415 = vld [vmem:[%s414] sm:$0x1]
        %v417 = vlaneseq
        %v418 = vshrl.u32 %v417, 7
        %v419 = vsub.s32 0, %v418
        %v420 = vrot.slane %v415, %v419
        %v423 = vsel %vm298, %v411, 0
        %v426 = vsel %vm302, %v413, 0
        %428 = vmatprep.subr.bf16.mxu0 0
        %429 = vmatpush1.bf16.msra.mxu0 0
        %430 = vmatprep.subr.bf16.mxu0 0
        %431 = vmatpush1.bf16.msra.mxu0 0
        %432 = vmatprep.subr.bf16.mxu0 0
        %433 = vmatpush1.bf16.msra.mxu0 0
        %434 = vmatprep.subr.bf16.mxu0 0
        %435 = vmatpush1.bf16.msra.mxu0 0
        %436 = vmatprep.subr.bf16.mxu0 0
        %437 = vmatpush1.bf16.msra.mxu0 0
        %438 = vmatprep.subr.bf16.mxu0 0
        %439 = vmatpush1.bf16.msra.mxu0 0
        %440 = vmatprep.subr.bf16.mxu0 0
        %441 = vmatpush1.bf16.msra.mxu0 0
        %442 = vmatprep.subr.bf16.mxu0 0
        %443 = vmatpush1.bf16.msra.mxu0 %v426
        %444 = vmatprep.subr.bf16.mxu0 0
        %445 = vmatpush2.bf16.msra.mxu0 0
        %446 = vmatprep.subr.bf16.mxu0 0
        %447 = vmatpush2.bf16.msra.mxu0 0
        %448 = vmatprep.subr.bf16.mxu0 0
        %449 = vmatpush2.bf16.msra.mxu0 0
        %450 = vmatprep.subr.bf16.mxu0 0
        %451 = vmatpush2.bf16.msra.mxu0 0
        %452 = vmatprep.subr.bf16.mxu0 0
        %453 = vmatpush2.bf16.msra.mxu0 0
        %454 = vmatprep.subr.bf16.mxu0 0
        %455 = vmatpush2.bf16.msra.mxu0 0
        %456 = vmatprep.subr.bf16.mxu0 0
        %457 = vmatpush2.bf16.msra.mxu0 0
        %458 = vmatprep.subr.bf16.mxu0 0
        %459 = vmatpush2.bf16.msra.mxu0 0
        %460 = vmatprep.mubr.bf16.mxu0 0
        %461 = vmatmul.mubr.bf16.gmra.mxu0 %v423
        %v462 = vpop.f32.mrf.mxu0
        %v463 = vadd.f32 %v420, %v462
        %v464 = vpop.f32.mrf.mxu0
        %v465 = vpop.f32.mrf.mxu0
        %v466 = vpop.f32.mrf.mxu0
        %467 = vdwg.mxu0
        %469 = vrot.lane.b32.xlu0 %v463, 16
        %v470 = vpop.permute.xlu0 %469
        %vm472 = vcmask 130048
        %v473 = vsel %vm472, %v341, %v470
        %v474 = vunpack.c.l.bf16 %v221
        %v475 = vadd.f32 %v474, %v473
        %v476 = vpack.c.bf16 %v475, %v475
        %vm477 = vcmask 257024
        %478 = vst.msk [vmem:[%s215] sm:$0xf] %vm477, %v476
        %s479 = sand.u32 %s137, 1
        %s480 = scalar_lea.sflag [#allocation3], %s479
        %s481 = sand.u32 %s137, 1
        %s482 = smul.addr %s481, 4
        %s483 = scalar_lea.vmem [#allocation2], %s482
        // Predicated region
        $region41: #{tpu_custom_call.1} parent=39 // pred_check
          %p484 = pneg %p147
        $region42: #{tpu_custom_call.1} parent=39 // pred_check_branch
          %486 = sbr.rel (%p484) target = $region44
        $region43: #{tpu_custom_call.1} parent=39 // pred_region
          %s488 = ssub.s32 64, 64
          %489 = vsyncadd %s480, %s488
          %s490 = smul.addr %s19, 64
          %s491 = scalar_lea.hbm %s5, %s490
          %s493 = sshll.u32 %s483, 4
          %s494 = int_to_ptr.vmem [resolvable:$true] %s493
          %496 = dma.vmem_to_hbm [thread:$0]  %s494, 64, %s491, %s480
        $region44: #{tpu_custom_call.1} parent=39 // pred_fallthru
          _
      $region40: #{tpu_custom_call.1} parent=5 // pred_fallthru
        _
      %p497 = scmp.le.s32.totalorder 2, %s14
      // Predicated region
      $region45: #{tpu_custom_call.1} parent=5 // pred_check
        %p498 = pneg %p497
      $region46: #{tpu_custom_call.1} parent=5 // pred_check_branch
        %500 = sbr.rel (%p498) target = $region48
      $region47: #{tpu_custom_call.1} parent=5 // pred_region
        %s501 = ssub.s32 %s14, 2
        // Predicated region
        $region49: #{tpu_custom_call.1} parent=47 // pred_check
          %p502 = pneg %p153
        $region50: #{tpu_custom_call.1} parent=47 // pred_check_branch
          %504 = sbr.rel (%p502) target = $region52
        $region51: #{tpu_custom_call.1} parent=47 // pred_region
          %s505 = sand.u32 %s138, 1
          %s506 = scalar_lea.sflag [#allocation3], %s505
          %s507 = sand.u32 %s138, 1
          %s508 = smul.addr %s507, 4
          %s509 = scalar_lea.vmem [#allocation2], %s508
          %510 = dma.done %s506, 64
        $region52: #{tpu_custom_call.1} parent=47 // pred_fallthru
          _
      $region48: #{tpu_custom_call.1} parent=5 // pred_fallthru
        _
    $region6: #{tpu_custom_call.1} parent=1 // loop_footer
      %s18 = sadd.s32 1, %s14
    $region7: #{tpu_custom_call.1} parent=1 // loop_footer_branch
      %13 = sbr.rel target = $region3
    $region8: #{tpu_custom_call.1} parent=1 // loop_exit
      _
    %511 = vsyncpa [#allocation3], 1
    %s512 = scalar_lea.sflag [#allocation3], 1
    %513 = vsyncpa %s512, 1

</llo_original>
